<compile_context>
chip_gen: v7x
topology: tpu7x:2x2x1
jax: 0.10.0
libtpu: 0.0.40
codegen_flags: <defaults>
</compile_context>

<pallas_src>
import math

import jax
import jax.numpy as jnp
from jax import lax
from jax.experimental import pallas as pl
from jax.experimental.pallas import tpu as pltpu

_VMEM_LIMIT = 32 * 1024 * 1024  # safe on v5e/v6e (128 MiB) and v7x (64 MiB physical)


# -----------------------------------------------------------------------------
# Kernel 1: fused per-channel normalization  y[c, s] = x[c, s] * scale[c] + bias[c]
# -----------------------------------------------------------------------------
def _norm_kernel(x_ref, s_ref, b_ref, o_ref):
    o_ref[...] = x_ref[...] * s_ref[...] + b_ref[...]


def _normalize_pallas(img, scale, bias, tile_cols=32768):
    """img: (C, H, W) float32; scale/bias: (C,).  Returns normalized (C, H, W)."""
    C, H, W = img.shape
    HW = H * W
    x = img.reshape(C, HW)                        # lane-dense 2-D view (free reshape)
    TS = HW if HW <= tile_cols else tile_cols     # full extent, or a large 128-multiple tile
    out = pl.pallas_call(
        _norm_kernel,
        out_shape=jax.ShapeDtypeStruct((C, HW), img.dtype),
        grid_spec=pltpu.PrefetchScalarGridSpec(
            num_scalar_prefetch=0,
            grid=(pl.cdiv(HW, TS),),
            in_specs=[
                pl.BlockSpec((C, TS), lambda i: (0, i)),
                pl.BlockSpec((C, 1), lambda i: (0, 0)),
                pl.BlockSpec((C, 1), lambda i: (0, 0)),
            ],
            out_specs=pl.BlockSpec((C, TS), lambda i: (0, i)),
        ),
        compiler_params=pltpu.CompilerParams(
            dimension_semantics=("parallel",),
            vmem_limit_bytes=_VMEM_LIMIT,
        ),
    )(x, scale.reshape(C, 1), bias.reshape(C, 1))
    return out.reshape(C, H, W)


# -----------------------------------------------------------------------------
# Kernel 2: stem conv as MXU matmul with fused frozen-BN + ReLU epilogue.
#   out[n, co, m] = relu( (sum_k W[co, k] * X[n, k, m]) * bn_scale[co] + bn_bias[co] )
# -----------------------------------------------------------------------------
def _conv_mm_kernel(w_ref, x_ref, s_ref, b_ref, o_ref):
    acc = jnp.dot(w_ref[...], x_ref[...], preferred_element_type=jnp.float32)
    o_ref[...] = jnp.maximum(acc * s_ref[...] + b_ref[...], 0.0).astype(o_ref.dtype)


def _conv_bn_relu_pallas(w2d, xk, bn_scale, bn_bias, out_dtype, tile_m=8192):
    """w2d: (Cout, K); xk: (N, K, M) im2col patches; bn_*: (Cout,).  Returns (N, Cout, M)."""
    Cout, K = w2d.shape
    N, _, M = xk.shape
    TM = M if M <= tile_m else tile_m             # full extent, or a 128-multiple tile
    return pl.pallas_call(
        _conv_mm_kernel,
        out_shape=jax.ShapeDtypeStruct((N, Cout, M), out_dtype),
        grid_spec=pltpu.PrefetchScalarGridSpec(
            num_scalar_prefetch=0,
            grid=(N, pl.cdiv(M, TM)),
            in_specs=[
                pl.BlockSpec((Cout, K), lambda n, i: (0, 0)),      # weights resident
                pl.BlockSpec((None, K, TM), lambda n, i: (n, 0, i)),
                pl.BlockSpec((Cout, 1), lambda n, i: (0, 0)),
                pl.BlockSpec((Cout, 1), lambda n, i: (0, 0)),
            ],
            out_specs=pl.BlockSpec((None, Cout, TM), lambda n, i: (n, 0, i)),  # lane-dense
        ),
        compiler_params=pltpu.CompilerParams(
            dimension_semantics=("parallel", "parallel"),
            vmem_limit_bytes=_VMEM_LIMIT,
        ),
    )(w2d, xk, bn_scale.reshape(Cout, 1), bn_bias.reshape(Cout, 1))


# -----------------------------------------------------------------------------
# GeneralizedRCNNTransform pieces (resize + batch) and the stem "seq"
# -----------------------------------------------------------------------------
def _resize_image(img, min_size, max_size):
    """GeneralizedRCNNTransform.resize for one (C, H, W) image (targets=None)."""
    C, H, W = img.shape
    scale = min(float(min_size) / min(H, W), float(max_size) / max(H, W))
    new_h = max(1, int(math.floor(H * scale)))
    new_w = max(1, int(math.floor(W * scale)))
    if (new_h, new_w) == (H, W):
        return img
    # TODO(synk): bilinear resampling is a data-dependent gather with no clean Mosaic
    # lowering at this scope; use XLA's resize.
    return jax.image.resize(img, (C, new_h, new_w), method="bilinear")


def _batch_images(images, size_divisible):
    """GeneralizedRCNNTransform.batch_images: zero-pad to a common size_divisible shape."""
    C = images[0].shape[0]
    max_h = max(int(img.shape[-2]) for img in images)
    max_w = max(int(img.shape[-1]) for img in images)
    Hb = int(math.ceil(max_h / size_divisible) * size_divisible)
    Wb = int(math.ceil(max_w / size_divisible) * size_divisible)
    batched = jnp.zeros((len(images), C, Hb, Wb), images[0].dtype)
    for i, img in enumerate(images):
        h, w = int(img.shape[-2]), int(img.shape[-1])
        batched = batched.at[i, :, :h, :w].set(img)
    return batched


def _stem_forward(batched, params, use_pallas):
    """Representative `seq` head: conv7x7/s2 + frozen BN + ReLU + maxpool3x3/s2."""
    conv_w = params["conv_w"]                      # (Cout, Cin, 7, 7)
    Cout = conv_w.shape[0]
    bn_scale, bn_bias = params["bn_scale"], params["bn_bias"]

    if use_pallas:
        # im2col (layout plumbing only) -> single fused MXU matmul kernel.
        # conv_general_dilated_patches emits the feature dim (cin, kh, kw)-major, which
        # matches conv_w.reshape(Cout, Cin*7*7); no transposes needed anywhere.
        patches = lax.conv_general_dilated_patches(
            batched, filter_shape=(7, 7), window_strides=(2, 2),
            padding=((3, 3), (3, 3)))
        N, K, OH, OW = patches.shape               # K = Cin*7*7
        xk = patches.reshape(N, K, OH * OW)        # free reshape (merge trailing dims)
        w2d = conv_w.reshape(Cout, K)
        y = _conv_bn_relu_pallas(w2d, xk, bn_scale, bn_bias, batched.dtype)
        y = y.reshape(N, Cout, OH, OW)             # free reshape (split trailing dim)
    else:
        y = lax.conv_general_dilated(
            batched, conv_w, window_strides=(2, 2), padding=((3, 3), (3, 3)),
            dimension_numbers=("NCHW", "OIHW", "NCHW"),
            precision=lax.Precision.HIGHEST)
        y = y * bn_scale.reshape(1, -1, 1, 1) + bn_bias.reshape(1, -1, 1, 1)
        y = jnp.maximum(y, 0.0)

    # TODO(synk): 3x3 stride-2 max-pool requires lane-strided window gathers with no clean
    # Mosaic lowering; left to XLA reduce_window.
    y = lax.reduce_window(
        y, -jnp.inf, lax.max,
        window_dimensions=(1, 1, 3, 3), window_strides=(1, 1, 2, 2),
        padding=((0, 0), (0, 0), (1, 1), (1, 1)))
    return y


class HeadRCNNPallas:
    """JAX/Pallas port of torchdistill HeadRCNN.forward (transform + head `seq`)."""

    def __init__(self, params):
        self.params = params

    def __call__(self, images, targets=None):
        return self.forward(images, targets)

    def forward(self, images, targets=None):
        p = self.params
        # Mirror the original bookkeeping (computed but unused downstream, as in the spec).
        original_image_sizes = []
        for img in images:
            val = img.shape[-2:]
            assert len(val) == 2
            original_image_sizes.append((int(val[0]), int(val[1])))
        # `targets` only affects box rescaling inside the transform, not the returned tensor.

        # --- transform: normalize (Pallas) -> resize -> batch/pad ---
        norm_scale = (1.0 / p["image_std"]).astype(jnp.float32)
        norm_bias = (-p["image_mean"] / p["image_std"]).astype(jnp.float32)
        processed = []
        for img in images:
            x = _normalize_pallas(img.astype(jnp.float32), norm_scale, norm_bias)
            x = _resize_image(x, p["min_size"], p["max_size"])
            processed.append(x)
        batched = _batch_images(processed, p["size_divisible"])

        # --- seq: head of the R-CNN backbone ---
        return _stem_forward(batched, p, use_pallas=True)


def _reference_forward(images, params):
    """Pure-XLA reference of the same forward, for numerical validation."""
    p = params
    norm_scale = (1.0 / p["image_std"]).astype(jnp.float32)
    norm_bias = (-p["image_mean"] / p["image_std"]).astype(jnp.float32)
    processed = []
    for img in images:
        x = img.astype(jnp.float32) * norm_scale.reshape(-1, 1, 1) + norm_bias.reshape(-1, 1, 1)
        x = _resize_image(x, p["min_size"], p["max_size"])
        processed.append(x)
    batched = _batch_images(processed, p["size_divisible"])
    return _stem_forward(batched, p, use_pallas=False)


if __name__ == "__main__":
    key = jax.random.PRNGKey(0)
    k_img1, k_img2, k_w, k_g, k_b, k_m, k_v = jax.random.split(key, 7)

    # Two small variable-size images in [0, 1] (list-of-CHW, as torchvision expects).
    images = [
        jax.random.uniform(k_img1, (3, 16, 16), dtype=jnp.float32),
        jax.random.uniform(k_img2, (3, 20, 24), dtype=jnp.float32),
    ]

    cout = 64
    conv_w = jax.random.normal(k_w, (cout, 3, 7, 7), jnp.float32) * (2.0 / (3 * 7 * 7)) ** 0.5
    gamma = 1.0 + 0.1 * jax.random.normal(k_g, (cout,), jnp.float32)
    beta = 0.1 * jax.random.normal(k_b, (cout,), jnp.float32)
    run_mean = 0.1 * jax.random.normal(k_m, (cout,), jnp.float32)
    run_var = jnp.abs(1.0 + 0.1 * jax.random.normal(k_v, (cout,), jnp.float32))
    bn_scale = gamma / jnp.sqrt(run_var + 1e-5)     # frozen BN folded to per-channel scale/bias
    bn_bias = beta - run_mean * bn_scale

    params = {
        "image_mean": jnp.array([0.485, 0.456, 0.406], jnp.float32),
        "image_std": jnp.array([0.229, 0.224, 0.225], jnp.float32),
        "min_size": 32, "max_size": 64, "size_divisible": 32,
        "conv_w": conv_w, "bn_scale": bn_scale, "bn_bias": bn_bias,
    }

    model = HeadRCNNPallas(params)
    out = jax.block_until_ready(model(images))
    ref = jax.block_until_ready(_reference_forward(images, params))

    assert out.shape == ref.shape == (2, cout, 8, 16), (out.shape, ref.shape)
    # Tolerance covers MXU default-precision (bf16-pass) matmul vs HIGHEST-precision XLA conv.
    max_err = float(jnp.max(jnp.abs(out - ref)))
    assert jnp.allclose(out, ref, atol=5e-2, rtol=5e-2), max_err
    print("KERNEL_OK")
</pallas_src>

<mosaic_0001>
module attributes {stable_mosaic.version = 11 : i64} {
  func.func @_norm_kernel(%arg0: i32, %arg1: memref<3x256xf32, #tpu.memory_space<vmem>>, %arg2: memref<3x1xf32, #tpu.memory_space<vmem>>, %arg3: memref<3x1xf32, #tpu.memory_space<vmem>>, %arg4: memref<3x256xf32, #tpu.memory_space<vmem>>) attributes {dimension_semantics = [#tpu.dimension_semantics<parallel>], iteration_bounds = array<i64: 1>, scalar_prefetch = 0 : i64, scratch_operands = 0 : i64, tpu.core_type = #tpu.core_type<tc>, window_params = [{transform_indices = @transform_0, window_bounds = array<i64: 3, 256>}, {pipeline_mode = #tpu.pipeline_mode<synchronous>, transform_indices = @transform_1, window_bounds = array<i64: 3, 1>}, {pipeline_mode = #tpu.pipeline_mode<synchronous>, transform_indices = @transform_2, window_bounds = array<i64: 3, 1>}, {transform_indices = @transform_3, window_bounds = array<i64: 3, 256>}]} {
    %c0 = arith.constant 0 : index
    %c0_0 = arith.constant 0 : index
    %0 = vector.load %arg1[%c0, %c0_0] : memref<3x256xf32, #tpu.memory_space<vmem>>, vector<3x256xf32>
    %c0_1 = arith.constant 0 : index
    %c0_2 = arith.constant 0 : index
    %1 = vector.load %arg2[%c0_1, %c0_2] : memref<3x1xf32, #tpu.memory_space<vmem>>, vector<3x1xf32>
    %2 = vector.broadcast %1 : vector<3x1xf32> to vector<3x256xf32>
    %3 = arith.mulf %0, %2 : vector<3x256xf32>
    %c0_3 = arith.constant 0 : index
    %c0_4 = arith.constant 0 : index
    %4 = vector.load %arg3[%c0_3, %c0_4] : memref<3x1xf32, #tpu.memory_space<vmem>>, vector<3x1xf32>
    %5 = vector.broadcast %4 : vector<3x1xf32> to vector<3x256xf32>
    %6 = arith.addf %3, %5 : vector<3x256xf32>
    %c0_5 = arith.constant 0 : index
    %c0_6 = arith.constant 0 : index
    %7 = vector.load %arg4[%c0_5, %c0_6] : memref<3x256xf32, #tpu.memory_space<vmem>>, vector<3x256xf32>
    tpu.vector_store %arg4[%c0_5, %c0_6], %6 {strides = array<i32>} : memref<3x256xf32, #tpu.memory_space<vmem>>, vector<3x256xf32>,
    return
  }
  func.func @transform_0(%arg0: i32) -> (i32, i32) {
    %c0_i32 = arith.constant 0 : i32
    %c0_i32_0 = arith.constant 0 : i32
    return %c0_i32, %arg0 : i32, i32
  }
  func.func @transform_1(%arg0: i32) -> (i32, i32) {
    %c0_i32 = arith.constant 0 : i32
    %c0_i32_0 = arith.constant 0 : i32
    %c0_i32_1 = arith.constant 0 : i32
    return %c0_i32, %c0_i32_0 : i32, i32
  }
  func.func @transform_2(%arg0: i32) -> (i32, i32) {
    %c0_i32 = arith.constant 0 : i32
    %c0_i32_0 = arith.constant 0 : i32
    %c0_i32_1 = arith.constant 0 : i32
    return %c0_i32, %c0_i32_0 : i32, i32
  }
  func.func @transform_3(%arg0: i32) -> (i32, i32) {
    %c0_i32 = arith.constant 0 : i32
    %c0_i32_0 = arith.constant 0 : i32
    return %c0_i32, %arg0 : i32, i32
  }
}

</mosaic_0001>

<llo_original>
// kernel: tpu_custom_call.1
$region0: #{tpu_custom_call.1}
  #allocation0 [shape = 'u32[]', space=smem, size = 0x4, offset = 0x4, fixed_abs, tag = 'smem constant byte address 0x4 - core index']
  #allocation1 [shape = 'u32[144,128]{1,0:T(1,128)}', space=vmem, size = 0x12000, scoped, tag = 'internal scratch']
  %s0 = inlined_call_operand.vmem [shape: f32[3,256], index: 0, kind: input, shape index: {}]
  %s1 = inlined_call_operand.vmem [shape: f32[3,1], index: 1, kind: input, shape index: {}]
  %s2 = inlined_call_operand.vmem [shape: f32[3,1], index: 2, kind: input, shape index: {}]
  %s3 = inlined_call_operand.hbm [shape: f32[3,256], index: 3, kind: output, shape index: {}]
  %s4 = sld [smem:[#allocation0]]
  $region22: #{tpu_custom_call.1} parent=0
    _
  %s6 = ssub.s32 1, %s4
  %s7 = scalar_select 0, %s6, %s4
  $region1: #{tpu_custom_call.1} parent=0
    #allocation2 [shape = 'u8[4096]{0}', space=vmem, size = 0x1000, scoped, tag = 'output window, operand 0, single buffered']
    #allocation3 [shape = 's32[1]{0}', space=sflag, size = 0x4, scoped, tag = 'scoped memory for tpu_custom_call.1']
    %8 = vsyncpa [#allocation3], 0
    // Predicated region
    $region2: #{tpu_custom_call.1} parent=1 // pred_check
      _
    $region3: #{tpu_custom_call.1} parent=1 // pred_check_branch
      %10 = sbr.rel (0) target = $region5
    $region4: #{tpu_custom_call.1} parent=1 // pred_region
      _
    $region5: #{tpu_custom_call.1} parent=1 // pred_fallthru
      _
    // Predicated region
    $region6: #{tpu_custom_call.1} parent=1 // pred_check
      _
    $region7: #{tpu_custom_call.1} parent=1 // pred_check_branch
      %12 = sbr.rel (0) target = $region9
    $region8: #{tpu_custom_call.1} parent=1 // pred_region
      _
    $region9: #{tpu_custom_call.1} parent=1 // pred_fallthru
      _
    // Predicated region
    $region10: #{tpu_custom_call.1} parent=1 // pred_check
      _
    $region11: #{tpu_custom_call.1} parent=1 // pred_check_branch
      %14 = sbr.rel (0) target = $region13
    $region12: #{tpu_custom_call.1} parent=1 // pred_region
      _
    $region13: #{tpu_custom_call.1} parent=1 // pred_fallthru
      _
    %v15 = vld [vmem:[%s0] sm:$0x77]
    %v16 = vld [vmem:[%s1] sm:$0x7]
    %18 = vset.pattern.permute.xlu0 0
    %19 = vperm.xlu0 %18, %v16
    %v20 = vpop.permute.xlu0 %19
    %v22 = vunpack.c.l.s4 839922192
    %v23 = vunpack.c.0.s8 %v22
    %v24 = vlaneseq
    %v25 = vshrl.u32 %v24, 7
    %v26 = vsub.s32 %v23, %v25
    %v27 = vrot.slane %v20, %v26
    %v29 = vmul.f32 %v15, %v27
    %v30 = vld [vmem:[%s2] sm:$0x7]
    %32 = vset.pattern.permute.xlu0 0
    %33 = vperm.xlu0 %32, %v30
    %v34 = vpop.permute.xlu0 %33
    %v36 = vunpack.c.l.s4 839922192
    %v37 = vunpack.c.0.s8 %v36
    %v38 = vlaneseq
    %v39 = vshrl.u32 %v38, 7
    %v40 = vsub.s32 %v37, %v39
    %v41 = vrot.slane %v34, %v40
    %v43 = vadd.f32 %v29, %v41
    %44 = vst [vmem:[#allocation2] sm:$0x77] %v43
    // Predicated region
    $region14: #{tpu_custom_call.1} parent=1 // pred_check
      _
    $region15: #{tpu_custom_call.1} parent=1 // pred_check_branch
      %46 = sbr.rel (0) target = $region17
    $region16: #{tpu_custom_call.1} parent=1 // pred_region
      %s48 = ssub.s32 128, 128
      %49 = vsyncadd [#allocation3], %s48
      %s51 = sshll.u32 [#allocation2], 4
      %s52 = int_to_ptr.vmem [resolvable:$true] %s51
      %54 = dma.vmem_to_hbm [thread:$0]  %s52, 128, %s3, [#allocation3]
    $region17: #{tpu_custom_call.1} parent=1 // pred_fallthru
      _
    // Predicated region
    $region18: #{tpu_custom_call.1} parent=1 // pred_check
      _
    $region19: #{tpu_custom_call.1} parent=1 // pred_check_branch
      %56 = sbr.rel (0) target = $region21
    $region20: #{tpu_custom_call.1} parent=1 // pred_region
      %57 = dma.done [#allocation3], 128
    $region21: #{tpu_custom_call.1} parent=1 // pred_fallthru
      _
    %58 = vsyncpa [#allocation3], 1

</llo_original>
